<compile_context>
chip_gen: v6e
topology: v6e:2x2x1
jax: 0.10.0
libtpu: 0.0.40
codegen_flags: <defaults>
</compile_context>

<pallas_src>
import jax
import jax.numpy as jnp
from jax import lax
from jax.experimental import pallas as pl
from jax.experimental.pallas import tpu as pltpu


def _linear_kernel(x_ref, w_ref, b_ref, o_ref):
    # x_ref: (tm, F), w_ref: (C_pad, F), b_ref: (1, C_pad), o_ref: (tm, C_pad)
    # Contract over F (dim 1 of both operands) on the MXU with f32 accumulation.
    acc = lax.dot_general(
        x_ref[...], w_ref[...],
        dimension_numbers=(((1,), (1,)), ((), ())),
        preferred_element_type=jnp.float32,
    )
    o_ref[...] = (acc + b_ref[...]).astype(o_ref.dtype)


def classifier_forward(x, weight, bias, *, tm_max=512,
                       vmem_budget_bytes=24 * 1024 * 1024):
    """Equivalent of nn.Linear(features_size, n_classes).forward(x).

    x:      (B, F)  float32
    weight: (C, F)  float32   (PyTorch nn.Linear layout, used as-is)
    bias:   (C,)    float32
    returns (B, C)  float32
    """
    B, F = x.shape
    C, F_w = weight.shape
    assert F == F_w and bias.shape == (C,)
    itemsize = jnp.dtype(x.dtype).itemsize

    # Lane-dense output: pad the class dim to a multiple of 128 (zero weight
    # rows / zero bias entries are numerically inert), slice back after.
    C_pad = max(128, pl.cdiv(C, 128) * 128)
    w_p = jnp.pad(weight, ((0, C_pad - C), (0, 0)))          # (C_pad, F)
    b_p = jnp.pad(bias, (0, C_pad - C)).reshape(1, C_pad)    # (1, C_pad)

    if B <= tm_max:
        # Single resident block: whole operands live in VMEM, no grid loop.
        cost = pl.CostEstimate(
            flops=2 * B * F * C_pad,
            transcendentals=0,
            bytes_accessed=itemsize * (B * F + C_pad * F + B * C_pad),
        )
        out = pl.pallas_call(
            _linear_kernel,
            out_shape=jax.ShapeDtypeStruct((B, C_pad), x.dtype),
            cost_estimate=cost,
        )(x, w_p, b_p)
        return out[:, :C]

    # Large batch: tile the (fully independent) batch axis.
    # Size tm so double-buffered x/out tiles + the resident weight fit a VMEM
    # budget that is safe even for v7x (64 MiB physical / 32 MiB scoped).
    tm = tm_max
    while tm > 8 and (2 * tm * F + 2 * C_pad * F + 2 * tm * C_pad) * itemsize > vmem_budget_bytes:
        tm //= 2
    tm = max(tm, 8)

    n_tiles = pl.cdiv(B, tm)
    B_pad = n_tiles * tm
    x_p = jnp.pad(x, ((0, B_pad - B), (0, 0))) if B_pad != B else x

    cost = pl.CostEstimate(
        flops=2 * B_pad * F * C_pad,
        transcendentals=0,
        bytes_accessed=itemsize * (B_pad * F + C_pad * F + B_pad * C_pad),
    )
    out = pl.pallas_call(
        _linear_kernel,
        out_shape=jax.ShapeDtypeStruct((B_pad, C_pad), x.dtype),
        grid=(n_tiles,),
        in_specs=[
            pl.BlockSpec((tm, F), lambda i: (i, 0)),
            pl.BlockSpec((C_pad, F), lambda i: (0, 0)),   # resident across grid
            pl.BlockSpec((1, C_pad), lambda i: (0, 0)),   # resident across grid
        ],
        out_specs=pl.BlockSpec((tm, C_pad), lambda i: (i, 0)),
        compiler_params=pltpu.CompilerParams(
            dimension_semantics=("parallel",),
        ),
        cost_estimate=cost,
    )(x_p, w_p, b_p)
    return out[:B, :C]


if __name__ == "__main__":
    # Shapes consistent with the module defaults: Linear(2048, 7).
    batch = 4
    features_size = 2048
    n_classes = 7

    key = jax.random.PRNGKey(0)
    kx, kw, kb = jax.random.split(key, 3)

    x = jax.random.normal(kx, (batch, features_size), dtype=jnp.float32)
    # Deterministic synthetic parameters (same shapes as nn.Linear(F, C)).
    weight = jax.random.normal(kw, (n_classes, features_size), dtype=jnp.float32) * 0.02
    bias = jax.random.normal(kb, (n_classes,), dtype=jnp.float32) * 0.01

    # Small-batch (no-grid) path.
    out = classifier_forward(x, weight, bias)
    out = jax.block_until_ready(out)
    ref = x @ weight.T + bias
    assert out.shape == (batch, n_classes)
    assert jnp.allclose(out, ref, atol=1e-4, rtol=1e-4)

    # Exercise the tiled large-batch path as well (batch axis marked parallel).
    big_batch = 64
    xb = jax.random.normal(kx, (big_batch, features_size), dtype=jnp.float32)
    out_b = classifier_forward(xb, weight, bias, tm_max=16)
    out_b = jax.block_until_ready(out_b)
    ref_b = xb @ weight.T + bias
    assert out_b.shape == (big_batch, n_classes)
    assert jnp.allclose(out_b, ref_b, atol=1e-4, rtol=1e-4)

    print("KERNEL_OK")
</pallas_src>

<mosaic_0001>
module attributes {stable_mosaic.version = 11 : i64} {
  func.func @_linear_kernel(%arg0: memref<4x2048xf32, #tpu.memory_space<vmem>>, %arg1: memref<128x2048xf32, #tpu.memory_space<vmem>>, %arg2: memref<1x128xf32, #tpu.memory_space<vmem>>, %arg3: memref<4x128xf32, #tpu.memory_space<vmem>>) attributes {dimension_semantics = [], scalar_prefetch = 0 : i64, scratch_operands = 0 : i64, tpu.core_type = #tpu.core_type<tc>} {
    %c0 = arith.constant 0 : index
    %c0_0 = arith.constant 0 : index
    %0 = vector.load %arg0[%c0, %c0_0] : memref<4x2048xf32, #tpu.memory_space<vmem>>, vector<4x2048xf32>
    %c0_1 = arith.constant 0 : index
    %c0_2 = arith.constant 0 : index
    %1 = vector.load %arg1[%c0_1, %c0_2] : memref<128x2048xf32, #tpu.memory_space<vmem>>, vector<128x2048xf32>
    %cst = arith.constant dense<0.000000e+00> : vector<4x128xf32>
    %2 = tpu.matmul %0, %1, %cst {dimension_numbers = #tpu.dot_dimension_numbers<[1], [1], [0], [0], [0, 0, 1, 0], [], []>} : vector<4x2048xf32>, vector<128x2048xf32>, vector<4x128xf32> -> vector<4x128xf32>
    %c0_3 = arith.constant 0 : index
    %c0_4 = arith.constant 0 : index
    %3 = vector.load %arg2[%c0_3, %c0_4] : memref<1x128xf32, #tpu.memory_space<vmem>>, vector<1x128xf32>
    %4 = vector.broadcast %3 : vector<1x128xf32> to vector<4x128xf32>
    %5 = arith.addf %2, %4 : vector<4x128xf32>
    %c0_5 = arith.constant 0 : index
    %c0_6 = arith.constant 0 : index
    %6 = vector.load %arg3[%c0_5, %c0_6] : memref<4x128xf32, #tpu.memory_space<vmem>>, vector<4x128xf32>
    tpu.vector_store %arg3[%c0_5, %c0_6], %5 {strides = array<i32>} : memref<4x128xf32, #tpu.memory_space<vmem>>, vector<4x128xf32>,
    return
  }
}

</mosaic_0001>

<llo_original>
// kernel: tpu_custom_call.1
$region0: #{tpu_custom_call.1}
  #allocation0 [shape = 'u32[]', space=smem, size = 0x4, offset = 0x4, fixed_abs, tag = 'smem constant byte address 0x4 - core index']
  #allocation1 [shape = 'u32[144,128]{1,0:T(1,128)}', space=vmem, size = 0x12000, scoped, tag = 'internal scratch']
  %s0 = inlined_call_operand.hbm [shape: f32[4,2048], index: 0, kind: input, shape index: {}]
  %s1 = inlined_call_operand.hbm [shape: f32[128,2048], index: 1, kind: input, shape index: {}]
  %s2 = inlined_call_operand.vmem [shape: f32[1,128], index: 2, kind: input, shape index: {}]
  %s3 = inlined_call_operand.hbm [shape: f32[4,128], index: 3, kind: output, shape index: {}]
  %s4 = sld [smem:[#allocation0]]
  $region30: #{tpu_custom_call.1} parent=0
    _
  %s6 = ssub.s32 1, %s4
  %s7 = scalar_select 0, %s6, %s4
  $region1: #{tpu_custom_call.1} parent=0
    #allocation2 [shape = 'u8[32768]{0}', space=vmem, size = 0x8000, scoped, tag = 'input window, operand 0, single buffered']
    #allocation3 [shape = 's32[1]{0}', space=sflag, size = 0x4, scoped, tag = 'scoped memory for tpu_custom_call.1']
    #allocation4 [shape = 's32[1]{0}', space=sflag, size = 0x4, scoped, tag = 'scoped memory for tpu_custom_call.1']
    #allocation5 [shape = 'u8[1048576]{0}', space=vmem, size = 0x100000, scoped, tag = 'input window, operand 1, single buffered']
    #allocation6 [shape = 's32[1]{0}', space=sflag, size = 0x4, scoped, tag = 'scoped memory for tpu_custom_call.1']
    #allocation7 [shape = 'u8[2048]{0}', space=vmem, size = 0x800, scoped, tag = 'output window, operand 0, single buffered']
    %8 = vsyncpa [#allocation3], 0
    %9 = vsyncpa [#allocation6], 0
    %10 = vsyncpa [#allocation4], 0
    // Predicated region
    $region2: #{tpu_custom_call.1} parent=1 // pred_check
      _
    $region3: #{tpu_custom_call.1} parent=1 // pred_check_branch
      %12 = sbr.rel (0) target = $region5
    $region4: #{tpu_custom_call.1} parent=1 // pred_region
      %s14 = ssub.s32 1024, 1024
      %15 = vsyncadd [#allocation3], %s14
      %s17 = sshll.u32 [#allocation2], 4
      %s18 = int_to_ptr.vmem [resolvable:$true] %s17
      %20 = dma.hbm_to_vmem [thread:$0]  %s0, 1024, %s18, [#allocation3]
    $region5: #{tpu_custom_call.1} parent=1 // pred_fallthru
      _
    // Predicated region
    $region6: #{tpu_custom_call.1} parent=1 // pred_check
      _
    $region7: #{tpu_custom_call.1} parent=1 // pred_check_branch
      %22 = sbr.rel (0) target = $region9
    $region8: #{tpu_custom_call.1} parent=1 // pred_region
      %s24 = ssub.s32 32768, 32768
      %25 = vsyncadd [#allocation6], %s24
      %s26 = sshll.u32 [#allocation5], 4
      %s27 = int_to_ptr.vmem [resolvable:$true] %s26
      %32 = dma.hbm_to_vmem [thread:$0]  %s1, 32768, %s27, [#allocation6], 2048, 2048, 128
    $region9: #{tpu_custom_call.1} parent=1 // pred_fallthru
      _
    // Predicated region
    $region10: #{tpu_custom_call.1} parent=1 // pred_check
      _
    $region11: #{tpu_custom_call.1} parent=1 // pred_check_branch
      %34 = sbr.rel (0) target = $region13
    $region12: #{tpu_custom_call.1} parent=1 // pred_region
      _
    $region13: #{tpu_custom_call.1} parent=1 // pred_fallthru
      _
    // Predicated region
    $region14: #{tpu_custom_call.1} parent=1 // pred_check
      _
    $region15: #{tpu_custom_call.1} parent=1 // pred_check_branch
      %36 = sbr.rel (0) target = $region17
    $region16: #{tpu_custom_call.1} parent=1 // pred_region
      %37 = dma.done [#allocation3], 1024
    $region17: #{tpu_custom_call.1} parent=1 // pred_fallthru
      _
    // Predicated region
    $region18: #{tpu_custom_call.1} parent=1 // pred_check
      _
    $region19: #{tpu_custom_call.1} parent=1 // pred_check_branch
      %39 = sbr.rel (0) target = $region21
    $region20: #{tpu_custom_call.1} parent=1 // pred_region
      %40 = dma.done [#allocation6], 32768
    $region21: #{tpu_custom_call.1} parent=1 // pred_fallthru
      _
    %v41 = vld [vmem:[#allocation2] sm:$0xff]
    %v42 = vld [vmem:[#allocation2 + $0x8] sm:$0xff]
    %v43 = vld [vmem:[#allocation2 + $0x10] sm:$0xff]
    %v44 = vld [vmem:[#allocation2 + $0x18] sm:$0xff]
    %v45 = vld [vmem:[#allocation2 + $0x20] sm:$0xff]
    %v46 = vld [vmem:[#allocation2 + $0x28] sm:$0xff]
    %v47 = vld [vmem:[#allocation2 + $0x30] sm:$0xff]
    %v48 = vld [vmem:[#allocation2 + $0x38] sm:$0xff]
    %v49 = vld [vmem:[#allocation5] sm:$0xff]
    %v50 = vld [vmem:[#allocation5 + $0x8] sm:$0xff]
    %v51 = vld [vmem:[#allocation5 + $0x10] sm:$0xff]
    %v52 = vld [vmem:[#allocation5 + $0x18] sm:$0xff]
    %v53 = vld [vmem:[#allocation5 + $0x20] sm:$0xff]
    %v54 = vld [vmem:[#allocation5 + $0x28] sm:$0xff]
    %v55 = vld [vmem:[#allocation5 + $0x30] sm:$0xff]
    %v56 = vld [vmem:[#allocation5 + $0x38] sm:$0xff]
    %v57 = vld [vmem:[#allocation5 + $0x40] sm:$0xff]
    %v58 = vld [vmem:[#allocation5 + $0x48] sm:$0xff]
    %v59 = vld [vmem:[#allocation5 + $0x50] sm:$0xff]
    %v60 = vld [vmem:[#allocation5 + $0x58] sm:$0xff]
    %v61 = vld [vmem:[#allocation5 + $0x60] sm:$0xff]
    %v62 = vld [vmem:[#allocation5 + $0x68] sm:$0xff]
    %v63 = vld [vmem:[#allocation5 + $0x70] sm:$0xff]
    %v64 = vld [vmem:[#allocation5 + $0x78] sm:$0xff]
    %v65 = vld [vmem:[#allocation5 + $0x80] sm:$0xff]
    %v66 = vld [vmem:[#allocation5 + $0x88] sm:$0xff]
    %v67 = vld [vmem:[#allocation5 + $0x90] sm:$0xff]
    %v68 = vld [vmem:[#allocation5 + $0x98] sm:$0xff]
    %v69 = vld [vmem:[#allocation5 + $0xa0] sm:$0xff]
    %v70 = vld [vmem:[#allocation5 + $0xa8] sm:$0xff]
    %v71 = vld [vmem:[#allocation5 + $0xb0] sm:$0xff]
    %v72 = vld [vmem:[#allocation5 + $0xb8] sm:$0xff]
    %v73 = vld [vmem:[#allocation5 + $0xc0] sm:$0xff]
    %v74 = vld [vmem:[#allocation5 + $0xc8] sm:$0xff]
    %v75 = vld [vmem:[#allocation5 + $0xd0] sm:$0xff]
    %v76 = vld [vmem:[#allocation5 + $0xd8] sm:$0xff]
    %v77 = vld [vmem:[#allocation5 + $0xe0] sm:$0xff]
    %v78 = vld [vmem:[#allocation5 + $0xe8] sm:$0xff]
    %v79 = vld [vmem:[#allocation5 + $0xf0] sm:$0xff]
    %v80 = vld [vmem:[#allocation5 + $0xf8] sm:$0xff]
    %v81 = vld [vmem:[#allocation5 + $0x100] sm:$0xff]
    %v82 = vld [vmem:[#allocation5 + $0x108] sm:$0xff]
    %v83 = vld [vmem:[#allocation5 + $0x110] sm:$0xff]
    %v84 = vld [vmem:[#allocation5 + $0x118] sm:$0xff]
    %v85 = vld [vmem:[#allocation5 + $0x120] sm:$0xff]
    %v86 = vld [vmem:[#allocation5 + $0x128] sm:$0xff]
    %v87 = vld [vmem:[#allocation5 + $0x130] sm:$0xff]
    %v88 = vld [vmem:[#allocation5 + $0x138] sm:$0xff]
    %v89 = vld [vmem:[#allocation5 + $0x140] sm:$0xff]
    %v90 = vld [vmem:[#allocation5 + $0x148] sm:$0xff]
    %v91 = vld [vmem:[#allocation5 + $0x150] sm:$0xff]
    %v92 = vld [vmem:[#allocation5 + $0x158] sm:$0xff]
    %v93 = vld [vmem:[#allocation5 + $0x160] sm:$0xff]
    %v94 = vld [vmem:[#allocation5 + $0x168] sm:$0xff]
    %v95 = vld [vmem:[#allocation5 + $0x170] sm:$0xff]
    %v96 = vld [vmem:[#allocation5 + $0x178] sm:$0xff]
    %v97 = vld [vmem:[#allocation5 + $0x180] sm:$0xff]
    %v98 = vld [vmem:[#allocation5 + $0x188] sm:$0xff]
    %v99 = vld [vmem:[#allocation5 + $0x190] sm:$0xff]
    %v100 = vld [vmem:[#allocation5 + $0x198] sm:$0xff]
    %v101 = vld [vmem:[#allocation5 + $0x1a0] sm:$0xff]
    %v102 = vld [vmem:[#allocation5 + $0x1a8] sm:$0xff]
    %v103 = vld [vmem:[#allocation5 + $0x1b0] sm:$0xff]
    %v104 = vld [vmem:[#allocation5 + $0x1b8] sm:$0xff]
    %v105 = vld [vmem:[#allocation5 + $0x1c0] sm:$0xff]
    %v106 = vld [vmem:[#allocation5 + $0x1c8] sm:$0xff]
    %v107 = vld [vmem:[#allocation5 + $0x1d0] sm:$0xff]
    %v108 = vld [vmem:[#allocation5 + $0x1d8] sm:$0xff]
    %v109 = vld [vmem:[#allocation5 + $0x1e0] sm:$0xff]
    %v110 = vld [vmem:[#allocation5 + $0x1e8] sm:$0xff]
    %v111 = vld [vmem:[#allocation5 + $0x1f0] sm:$0xff]
    %v112 = vld [vmem:[#allocation5 + $0x1f8] sm:$0xff]
    %v113 = vld [vmem:[#allocation5 + $0x200] sm:$0xff]
    %v114 = vld [vmem:[#allocation5 + $0x208] sm:$0xff]
    %v115 = vld [vmem:[#allocation5 + $0x210] sm:$0xff]
    %v116 = vld [vmem:[#allocation5 + $0x218] sm:$0xff]
    %v117 = vld [vmem:[#allocation5 + $0x220] sm:$0xff]
    %v118 = vld [vmem:[#allocation5 + $0x228] sm:$0xff]
    %v119 = vld [vmem:[#allocation5 + $0x230] sm:$0xff]
    %v120 = vld [vmem:[#allocation5 + $0x238] sm:$0xff]
    %v121 = vld [vmem:[#allocation5 + $0x240] sm:$0xff]
    %v122 = vld [vmem:[#allocation5 + $0x248] sm:$0xff]
    %v123 = vld [vmem:[#allocation5 + $0x250] sm:$0xff]
    %v124 = vld [vmem:[#allocation5 + $0x258] sm:$0xff]
    %v125 = vld [vmem:[#allocation5 + $0x260] sm:$0xff]
    %v126 = vld [vmem:[#allocation5 + $0x268] sm:$0xff]
    %v127 = vld [vmem:[#allocation5 + $0x270] sm:$0xff]
    %v128 = vld [vmem:[#allocation5 + $0x278] sm:$0xff]
    %v129 = vld [vmem:[#allocation5 + $0x280] sm:$0xff]
    %v130 = vld [vmem:[#allocation5 + $0x288] sm:$0xff]
    %v131 = vld [vmem:[#allocation5 + $0x290] sm:$0xff]
    %v132 = vld [vmem:[#allocation5 + $0x298] sm:$0xff]
    %v133 = vld [vmem:[#allocation5 + $0x2a0] sm:$0xff]
    %v134 = vld [vmem:[#allocation5 + $0x2a8] sm:$0xff]
    %v135 = vld [vmem:[#allocation5 + $0x2b0] sm:$0xff]
    %v136 = vld [vmem:[#allocation5 + $0x2b8] sm:$0xff]
    %v137 = vld [vmem:[#allocation5 + $0x2c0] sm:$0xff]
    %v138 = vld [vmem:[#allocation5 + $0x2c8] sm:$0xff]
    %v139 = vld [vmem:[#allocation5 + $0x2d0] sm:$0xff]
    %v140 = vld [vmem:[#allocation5 + $0x2d8] sm:$0xff]
    %v141 = vld [vmem:[#allocation5 + $0x2e0] sm:$0xff]
    %v142 = vld [vmem:[#allocation5 + $0x2e8] sm:$0xff]
    %v143 = vld [vmem:[#allocation5 + $0x2f0] sm:$0xff]
    %v144 = vld [vmem:[#allocation5 + $0x2f8] sm:$0xff]
    %v145 = vld [vmem:[#allocation5 + $0x300] sm:$0xff]
    %v146 = vld [vmem:[#allocation5 + $0x308] sm:$0xff]
    %v147 = vld [vmem:[#allocation5 + $0x310] sm:$0xff]
    %v148 = vld [vmem:[#allocation5 + $0x318] sm:$0xff]
    %v149 = vld [vmem:[#allocation5 + $0x320] sm:$0xff]
    %v150 = vld [vmem:[#allocation5 + $0x328] sm:$0xff]
    %v151 = vld [vmem:[#allocation5 + $0x330] sm:$0xff]
    %v152 = vld [vmem:[#allocation5 + $0x338] sm:$0xff]
    %v153 = vld [vmem:[#allocation5 + $0x340] sm:$0xff]
    %v154 = vld [vmem:[#allocation5 + $0x348] sm:$0xff]
    %v155 = vld [vmem:[#allocation5 + $0x350] sm:$0xff]
    %v156 = vld [vmem:[#allocation5 + $0x358] sm:$0xff]
    %v157 = vld [vmem:[#allocation5 + $0x360] sm:$0xff]
    %v158 = vld [vmem:[#allocation5 + $0x368] sm:$0xff]
    %v159 = vld [vmem:[#allocation5 + $0x370] sm:$0xff]
    %v160 = vld [vmem:[#allocation5 + $0x378] sm:$0xff]
    %v161 = vld [vmem:[#allocation5 + $0x380] sm:$0xff]
    %v162 = vld [vmem:[#allocation5 + $0x388] sm:$0xff]
    %v163 = vld [vmem:[#allocation5 + $0x390] sm:$0xff]
    %v164 = vld [vmem:[#allocation5 + $0x398] sm:$0xff]
    %v165 = vld [vmem:[#allocation5 + $0x3a0] sm:$0xff]
    %v166 = vld [vmem:[#allocation5 + $0x3a8] sm:$0xff]
    %v167 = vld [vmem:[#allocation5 + $0x3b0] sm:$0xff]
    %v168 = vld [vmem:[#allocation5 + $0x3b8] sm:$0xff]
    %v169 = vld [vmem:[#allocation5 + $0x3c0] sm:$0xff]
    %v170 = vld [vmem:[#allocation5 + $0x3c8] sm:$0xff]
    %v171 = vld [vmem:[#allocation5 + $0x3d0] sm:$0xff]
    %v172 = vld [vmem:[#allocation5 + $0x3d8] sm:$0xff]
    %v173 = vld [vmem:[#allocation5 + $0x3e0] sm:$0xff]
    %v174 = vld [vmem:[#allocation5 + $0x3e8] sm:$0xff]
    %v175 = vld [vmem:[#allocation5 + $0x3f0] sm:$0xff]
    %v176 = vld [vmem:[#allocation5 + $0x3f8] sm:$0xff]
    %v177 = vld [vmem:[#allocation5 + $0x400] sm:$0xff]
    %v178 = vld [vmem:[#allocation5 + $0x408] sm:$0xff]
    %v179 = vld [vmem:[#allocation5 + $0x410] sm:$0xff]
    %v180 = vld [vmem:[#allocation5 + $0x418] sm:$0xff]
    %v181 = vld [vmem:[#allocation5 + $0x420] sm:$0xff]
    %v182 = vld [vmem:[#allocation5 + $0x428] sm:$0xff]
    %v183 = vld [vmem:[#allocation5 + $0x430] sm:$0xff]
    %v184 = vld [vmem:[#allocation5 + $0x438] sm:$0xff]
    %v185 = vld [vmem:[#allocation5 + $0x440] sm:$0xff]
    %v186 = vld [vmem:[#allocation5 + $0x448] sm:$0xff]
    %v187 = vld [vmem:[#allocation5 + $0x450] sm:$0xff]
    %v188 = vld [vmem:[#allocation5 + $0x458] sm:$0xff]
    %v189 = vld [vmem:[#allocation5 + $0x460] sm:$0xff]
    %v190 = vld [vmem:[#allocation5 + $0x468] sm:$0xff]
    %v191 = vld [vmem:[#allocation5 + $0x470] sm:$0xff]
    %v192 = vld [vmem:[#allocation5 + $0x478] sm:$0xff]
    %v193 = vld [vmem:[#allocation5 + $0x480] sm:$0xff]
    %v194 = vld [vmem:[#allocation5 + $0x488] sm:$0xff]
    %v195 = vld [vmem:[#allocation5 + $0x490] sm:$0xff]
    %v196 = vld [vmem:[#allocation5 + $0x498] sm:$0xff]
    %v197 = vld [vmem:[#allocation5 + $0x4a0] sm:$0xff]
    %v198 = vld [vmem:[#allocation5 + $0x4a8] sm:$0xff]
    %v199 = vld [vmem:[#allocation5 + $0x4b0] sm:$0xff]
    %v200 = vld [vmem:[#allocation5 + $0x4b8] sm:$0xff]
    %v201 = vld [vmem:[#allocation5 + $0x4c0] sm:$0xff]
    %v202 = vld [vmem:[#allocation5 + $0x4c8] sm:$0xff]
    %v203 = vld [vmem:[#allocation5 + $0x4d0] sm:$0xff]
    %v204 = vld [vmem:[#allocation5 + $0x4d8] sm:$0xff]
    %v205 = vld [vmem:[#allocation5 + $0x4e0] sm:$0xff]
    %v206 = vld [vmem:[#allocation5 + $0x4e8] sm:$0xff]
    %v207 = vld [vmem:[#allocation5 + $0x4f0] sm:$0xff]
    %v208 = vld [vmem:[#allocation5 + $0x4f8] sm:$0xff]
    %v209 = vld [vmem:[#allocation5 + $0x500] sm:$0xff]
    %v210 = vld [vmem:[#allocation5 + $0x508] sm:$0xff]
    %v211 = vld [vmem:[#allocation5 + $0x510] sm:$0xff]
    %v212 = vld [vmem:[#allocation5 + $0x518] sm:$0xff]
    %v213 = vld [vmem:[#allocation5 + $0x520] sm:$0xff]
    %v214 = vld [vmem:[#allocation5 + $0x528] sm:$0xff]
    %v215 = vld [vmem:[#allocation5 + $0x530] sm:$0xff]
    %v216 = vld [vmem:[#allocation5 + $0x538] sm:$0xff]
    %v217 = vld [vmem:[#allocation5 + $0x540] sm:$0xff]
    %v218 = vld [vmem:[#allocation5 + $0x548] sm:$0xff]
    %v219 = vld [vmem:[#allocation5 + $0x550] sm:$0xff]
    %v220 = vld [vmem:[#allocation5 + $0x558] sm:$0xff]
    %v221 = vld [vmem:[#allocation5 + $0x560] sm:$0xff]
    %v222 = vld [vmem:[#allocation5 + $0x568] sm:$0xff]
    %v223 = vld [vmem:[#allocation5 + $0x570] sm:$0xff]
    %v224 = vld [vmem:[#allocation5 + $0x578] sm:$0xff]
    %v225 = vld [vmem:[#allocation5 + $0x580] sm:$0xff]
    %v226 = vld [vmem:[#allocation5 + $0x588] sm:$0xff]
    %v227 = vld [vmem:[#allocation5 + $0x590] sm:$0xff]
    %v228 = vld [vmem:[#allocation5 + $0x598] sm:$0xff]
    %v229 = vld [vmem:[#allocation5 + $0x5a0] sm:$0xff]
    %v230 = vld [vmem:[#allocation5 + $0x5a8] sm:$0xff]
    %v231 = vld [vmem:[#allocation5 + $0x5b0] sm:$0xff]
    %v232 = vld [vmem:[#allocation5 + $0x5b8] sm:$0xff]
    %v233 = vld [vmem:[#allocation5 + $0x5c0] sm:$0xff]
    %v234 = vld [vmem:[#allocation5 + $0x5c8] sm:$0xff]
    %v235 = vld [vmem:[#allocation5 + $0x5d0] sm:$0xff]
    %v236 = vld [vmem:[#allocation5 + $0x5d8] sm:$0xff]
    %v237 = vld [vmem:[#allocation5 + $0x5e0] sm:$0xff]
    %v238 = vld [vmem:[#allocation5 + $0x5e8] sm:$0xff]
    %v239 = vld [vmem:[#allocation5 + $0x5f0] sm:$0xff]
    %v240 = vld [vmem:[#allocation5 + $0x5f8] sm:$0xff]
    %v241 = vld [vmem:[#allocation5 + $0x600] sm:$0xff]
    %v242 = vld [vmem:[#allocation5 + $0x608] sm:$0xff]
    %v243 = vld [vmem:[#allocation5 + $0x610] sm:$0xff]
    %v244 = vld [vmem:[#allocation5 + $0x618] sm:$0xff]
    %v245 = vld [vmem:[#allocation5 + $0x620] sm:$0xff]
    %v246 = vld [vmem:[#allocation5 + $0x628] sm:$0xff]
    %v247 = vld [vmem:[#allocation5 + $0x630] sm:$0xff]
    %v248 = vld [vmem:[#allocation5 + $0x638] sm:$0xff]
    %v249 = vld [vmem:[#allocation5 + $0x640] sm:$0xff]
    %v250 = vld [vmem:[#allocation5 + $0x648] sm:$0xff]
    %v251 = vld [vmem:[#allocation5 + $0x650] sm:$0xff]
    %v252 = vld [vmem:[#allocation5 + $0x658] sm:$0xff]
    %v253 = vld [vmem:[#allocation5 + $0x660] sm:$0xff]
    %v254 = vld [vmem:[#allocation5 + $0x668] sm:$0xff]
    %v255 = vld [vmem:[#allocation5 + $0x670] sm:$0xff]
    %v256 = vld [vmem:[#allocation5 + $0x678] sm:$0xff]
    %v257 = vld [vmem:[#allocation5 + $0x680] sm:$0xff]
    %v258 = vld [vmem:[#allocation5 + $0x688] sm:$0xff]
    %v259 = vld [vmem:[#allocation5 + $0x690] sm:$0xff]
    %v260 = vld [vmem:[#allocation5 + $0x698] sm:$0xff]
    %v261 = vld [vmem:[#allocation5 + $0x6a0] sm:$0xff]
    %v262 = vld [vmem:[#allocation5 + $0x6a8] sm:$0xff]
    %v263 = vld [vmem:[#allocation5 + $0x6b0] sm:$0xff]
    %v264 = vld [vmem:[#allocation5 + $0x6b8] sm:$0xff]
    %v265 = vld [vmem:[#allocation5 + $0x6c0] sm:$0xff]
    %v266 = vld [vmem:[#allocation5 + $0x6c8] sm:$0xff]
    %v267 = vld [vmem:[#allocation5 + $0x6d0] sm:$0xff]
    %v268 = vld [vmem:[#allocation5 + $0x6d8] sm:$0xff]
    %v269 = vld [vmem:[#allocation5 + $0x6e0] sm:$0xff]
    %v270 = vld [vmem:[#allocation5 + $0x6e8] sm:$0xff]
    %v271 = vld [vmem:[#allocation5 + $0x6f0] sm:$0xff]
    %v272 = vld [vmem:[#allocation5 + $0x6f8] sm:$0xff]
    %v273 = vld [vmem:[#allocation5 + $0x700] sm:$0xff]
    %v274 = vld [vmem:[#allocation5 + $0x708] sm:$0xff]
    %v275 = vld [vmem:[#allocation5 + $0x710] sm:$0xff]
    %v276 = vld [vmem:[#allocation5 + $0x718] sm:$0xff]
    %v277 = vld [vmem:[#allocation5 + $0x720] sm:$0xff]
    %v278 = vld [vmem:[#allocation5 + $0x728] sm:$0xff]
    %v279 = vld [vmem:[#allocation5 + $0x730] sm:$0xff]
    %v280 = vld [vmem:[#allocation5 + $0x738] sm:$0xff]
    %v281 = vld [vmem:[#allocation5 + $0x740] sm:$0xff]
    %v282 = vld [vmem:[#allocation5 + $0x748] sm:$0xff]
    %v283 = vld [vmem:[#allocation5 + $0x750] sm:$0xff]
    %v284 = vld [vmem:[#allocation5 + $0x758] sm:$0xff]
    %v285 = vld [vmem:[#allocation5 + $0x760] sm:$0xff]
    %v286 = vld [vmem:[#allocation5 + $0x768] sm:$0xff]
    %v287 = vld [vmem:[#allocation5 + $0x770] sm:$0xff]
    %v288 = vld [vmem:[#allocation5 + $0x778] sm:$0xff]
    %v289 = vld [vmem:[#allocation5 + $0x780] sm:$0xff]
    %v290 = vld [vmem:[#allocation5 + $0x788] sm:$0xff]
    %v291 = vld [vmem:[#allocation5 + $0x790] sm:$0xff]
    %v292 = vld [vmem:[#allocation5 + $0x798] sm:$0xff]
    %v293 = vld [vmem:[#allocation5 + $0x7a0] sm:$0xff]
    %v294 = vld [vmem:[#allocation5 + $0x7a8] sm:$0xff]
    %v295 = vld [vmem:[#allocation5 + $0x7b0] sm:$0xff]
    %v296 = vld [vmem:[#allocation5 + $0x7b8] sm:$0xff]
    %v297 = vld [vmem:[#allocation5 + $0x7c0] sm:$0xff]
    %v298 = vld [vmem:[#allocation5 + $0x7c8] sm:$0xff]
    %v299 = vld [vmem:[#allocation5 + $0x7d0] sm:$0xff]
    %v300 = vld [vmem:[#allocation5 + $0x7d8] sm:$0xff]
    %v301 = vld [vmem:[#allocation5 + $0x7e0] sm:$0xff]
    %v302 = vld [vmem:[#allocation5 + $0x7e8] sm:$0xff]
    %v303 = vld [vmem:[#allocation5 + $0x7f0] sm:$0xff]
    %v304 = vld [vmem:[#allocation5 + $0x7f8] sm:$0xff]
    %v305 = vld [vmem:[%s2] sm:$0x1]
    %v307 = vlaneseq
    %v308 = vshrl.u32 %v307, 7
    %v309 = vsub.s32 0, %v308
    %v310 = vrot.slane %v305, %v309
    %v320 = vcombine.high %v41, %v41
    %v321 = vcombine.high %v42, %v42
    %v322 = vcombine.high %v43, %v43
    %v323 = vcombine.high %v44, %v44
    %v324 = vcombine.high %v45, %v45
    %v325 = vcombine.high %v46, %v46
    %v326 = vcombine.high %v47, %v47
    %v327 = vcombine.high %v48, %v48
    %336 = vmatprep.subr.mxu0 %v290
    %337 = vmatpush1.xpose.msra.mxu0 %v289
    %338 = vmatprep.subr.mxu0 %v274
    %339 = vmatpush1.xpose.msra.mxu0 %v273
    %340 = vmatprep.subr.mxu0 %v258
    %341 = vmatpush1.xpose.msra.mxu0 %v257
    %342 = vmatprep.subr.mxu0 %v242
    %343 = vmatpush1.xpose.msra.mxu0 %v241
    %344 = vmatprep.subr.mxu0 %v226
    %345 = vmatpush1.xpose.msra.mxu0 %v225
    %346 = vmatprep.subr.mxu0 %v210
    %347 = vmatpush1.xpose.msra.mxu0 %v209
    %348 = vmatprep.subr.mxu0 %v194
    %349 = vmatpush1.xpose.msra.mxu0 %v193
    %350 = vmatprep.subr.mxu0 %v178
    %351 = vmatpush1.xpose.msra.mxu0 %v177
    %352 = vmatprep.subr.mxu0 %v162
    %353 = vmatpush1.xpose.msra.mxu0 %v161
    %354 = vmatprep.subr.mxu0 %v146
    %355 = vmatpush1.xpose.msra.mxu0 %v145
    %356 = vmatprep.subr.mxu0 %v130
    %357 = vmatpush1.xpose.msra.mxu0 %v129
    %358 = vmatprep.subr.mxu0 %v114
    %359 = vmatpush1.xpose.msra.mxu0 %v113
    %360 = vmatprep.subr.mxu0 %v98
    %361 = vmatpush1.xpose.msra.mxu0 %v97
    %362 = vmatprep.subr.mxu0 %v82
    %363 = vmatpush1.xpose.msra.mxu0 %v81
    %364 = vmatprep.subr.mxu0 %v66
    %365 = vmatpush1.xpose.msra.mxu0 %v65
    %366 = vmatprep.subr.mxu0 %v50
    %367 = vmatpush1.xpose.msra.mxu0 %v49
    %368 = vmatprep.subr.mxu0 0.0
    %369 = vmatpush2.xpose.msra.mxu0 0.0
    %370 = vmatprep.subr.mxu0 0.0
    %371 = vmatpush2.xpose.msra.mxu0 0.0
    %372 = vmatprep.subr.mxu0 0.0
    %373 = vmatpush2.xpose.msra.mxu0 0.0
    %374 = vmatprep.subr.mxu0 0.0
    %375 = vmatpush2.xpose.msra.mxu0 0.0
    %376 = vmatprep.subr.mxu0 0.0
    %377 = vmatpush2.xpose.msra.mxu0 0.0
    %378 = vmatprep.subr.mxu0 0.0
    %379 = vmatpush2.xpose.msra.mxu0 0.0
    %380 = vmatprep.subr.mxu0 0.0
    %381 = vmatpush2.xpose.msra.mxu0 0.0
    %382 = vmatprep.subr.mxu0 0.0
    %383 = vmatpush2.xpose.msra.mxu0 0.0
    %384 = vmatprep.subr.mxu0 0.0
    %385 = vmatpush2.xpose.msra.mxu0 0.0
    %386 = vmatprep.subr.mxu0 0.0
    %387 = vmatpush2.xpose.msra.mxu0 0.0
    %388 = vmatprep.subr.mxu0 0.0
    %389 = vmatpush2.xpose.msra.mxu0 0.0
    %390 = vmatprep.subr.mxu0 0.0
    %391 = vmatpush2.xpose.msra.mxu0 0.0
    %392 = vmatprep.subr.mxu0 0.0
    %393 = vmatpush2.xpose.msra.mxu0 0.0
    %394 = vmatprep.subr.mxu0 0.0
    %395 = vmatpush2.xpose.msra.mxu0 0.0
    %396 = vmatprep.subr.mxu0 0.0
    %397 = vmatpush2.xpose.msra.mxu0 0.0
    %398 = vmatprep.subr.mxu0 0.0
    %399 = vmatpush2.xpose.msra.mxu0 0.0
    %400 = vmatprep.mubr.f32.mxu0 %v320
    %401 = vmatmul.mubr.f32.gmra.mxu0 %v41
    %v402 = vpop.f32.mrf.mxu0
    %v403 = vadd.f32 %v310, %v402
    %v404 = vpop.f32.mrf.mxu0
    %405 = vdwg.mxu0
    %406 = vmatprep.subr.mxu0 %v292
    %407 = vmatpush1.xpose.msra.mxu0 %v291
    %408 = vmatprep.subr.mxu0 %v276
    %409 = vmatpush1.xpose.msra.mxu0 %v275
    %410 = vmatprep.subr.mxu0 %v260
    %411 = vmatpush1.xpose.msra.mxu0 %v259
    %412 = vmatprep.subr.mxu0 %v244
    %413 = vmatpush1.xpose.msra.mxu0 %v243
    %414 = vmatprep.subr.mxu0 %v228
    %415 = vmatpush1.xpose.msra.mxu0 %v227
    %416 = vmatprep.subr.mxu0 %v212
    %417 = vmatpush1.xpose.msra.mxu0 %v211
    %418 = vmatprep.subr.mxu0 %v196
    %419 = vmatpush1.xpose.msra.mxu0 %v195
    %420 = vmatprep.subr.mxu0 %v180
    %421 = vmatpush1.xpose.msra.mxu0 %v179
    %422 = vmatprep.subr.mxu0 %v164
    %423 = vmatpush1.xpose.msra.mxu0 %v163
    %424 = vmatprep.subr.mxu0 %v148
    %425 = vmatpush1.xpose.msra.mxu0 %v147
    %426 = vmatprep.subr.mxu0 %v132
    %427 = vmatpush1.xpose.msra.mxu0 %v131
    %428 = vmatprep.subr.mxu0 %v116
    %429 = vmatpush1.xpose.msra.mxu0 %v115
    %430 = vmatprep.subr.mxu0 %v100
    %431 = vmatpush1.xpose.msra.mxu0 %v99
    %432 = vmatprep.subr.mxu0 %v84
    %433 = vmatpush1.xpose.msra.mxu0 %v83
    %434 = vmatprep.subr.mxu0 %v68
    %435 = vmatpush1.xpose.msra.mxu0 %v67
    %436 = vmatprep.subr.mxu0 %v52
    %437 = vmatpush1.xpose.msra.mxu0 %v51
    %438 = vmatprep.subr.mxu0 0.0
    %439 = vmatpush2.xpose.msra.mxu0 0.0
    %440 = vmatprep.subr.mxu0 0.0
    %441 = vmatpush2.xpose.msra.mxu0 0.0
    %442 = vmatprep.subr.mxu0 0.0
    %443 = vmatpush2.xpose.msra.mxu0 0.0
    %444 = vmatprep.subr.mxu0 0.0
    %445 = vmatpush2.xpose.msra.mxu0 0.0
    %446 = vmatprep.subr.mxu0 0.0
    %447 = vmatpush2.xpose.msra.mxu0 0.0
    %448 = vmatprep.subr.mxu0 0.0
    %449 = vmatpush2.xpose.msra.mxu0 0.0
    %450 = vmatprep.subr.mxu0 0.0
    %451 = vmatpush2.xpose.msra.mxu0 0.0
    %452 = vmatprep.subr.mxu0 0.0
    %453 = vmatpush2.xpose.msra.mxu0 0.0
    %454 = vmatprep.subr.mxu0 0.0
    %455 = vmatpush2.xpose.msra.mxu0 0.0
    %456 = vmatprep.subr.mxu0 0.0
    %457 = vmatpush2.xpose.msra.mxu0 0.0
    %458 = vmatprep.subr.mxu0 0.0
    %459 = vmatpush2.xpose.msra.mxu0 0.0
    %460 = vmatprep.subr.mxu0 0.0
    %461 = vmatpush2.xpose.msra.mxu0 0.0
    %462 = vmatprep.subr.mxu0 0.0
    %463 = vmatpush2.xpose.msra.mxu0 0.0
    %464 = vmatprep.subr.mxu0 0.0
    %465 = vmatpush2.xpose.msra.mxu0 0.0
    %466 = vmatprep.subr.mxu0 0.0
    %467 = vmatpush2.xpose.msra.mxu0 0.0
    %468 = vmatprep.subr.mxu0 0.0
    %469 = vmatpush2.xpose.msra.mxu0 0.0
    %470 = vmatprep.mubr.f32.mxu0 %v321
    %471 = vmatmul.mubr.f32.gmra.mxu0 %v42
    %v472 = vpop.f32.mrf.mxu0
    %v473 = vadd.f32 %v403, %v472
    %v474 = vpop.f32.mrf.mxu0
    %475 = vdwg.mxu0
    %476 = vmatprep.subr.mxu0 %v294
    %477 = vmatpush1.xpose.msra.mxu0 %v293
    %478 = vmatprep.subr.mxu0 %v278
    %479 = vmatpush1.xpose.msra.mxu0 %v277
    %480 = vmatprep.subr.mxu0 %v262
    %481 = vmatpush1.xpose.msra.mxu0 %v261
    %482 = vmatprep.subr.mxu0 %v246
    %483 = vmatpush1.xpose.msra.mxu0 %v245
    %484 = vmatprep.subr.mxu0 %v230
    %485 = vmatpush1.xpose.msra.mxu0 %v229
    %486 = vmatprep.subr.mxu0 %v214
    %487 = vmatpush1.xpose.msra.mxu0 %v213
    %488 = vmatprep.subr.mxu0 %v198
    %489 = vmatpush1.xpose.msra.mxu0 %v197
    %490 = vmatprep.subr.mxu0 %v182
    %491 = vmatpush1.xpose.msra.mxu0 %v181
    %492 = vmatprep.subr.mxu0 %v166
    %493 = vmatpush1.xpose.msra.mxu0 %v165
    %494 = vmatprep.subr.mxu0 %v150
    %495 = vmatpush1.xpose.msra.mxu0 %v149
    %496 = vmatprep.subr.mxu0 %v134
    %497 = vmatpush1.xpose.msra.mxu0 %v133
    %498 = vmatprep.subr.mxu0 %v118
    %499 = vmatpush1.xpose.msra.mxu0 %v117
    %500 = vmatprep.subr.mxu0 %v102
    %501 = vmatpush1.xpose.msra.mxu0 %v101
    %502 = vmatprep.subr.mxu0 %v86
    %503 = vmatpush1.xpose.msra.mxu0 %v85
    %504 = vmatprep.subr.mxu0 %v70
    %505 = vmatpush1.xpose.msra.mxu0 %v69
    %506 = vmatprep.subr.mxu0 %v54
    %507 = vmatpush1.xpose.msra.mxu0 %v53
    %508 = vmatprep.subr.mxu0 0.0
    %509 = vmatpush2.xpose.msra.mxu0 0.0
    %510 = vmatprep.subr.mxu0 0.0
    %511 = vmatpush2.xpose.msra.mxu0 0.0
    %512 = vmatprep.subr.mxu0 0.0
    %513 = vmatpush2.xpose.msra.mxu0 0.0
    %514 = vmatprep.subr.mxu0 0.0
    %515 = vmatpush2.xpose.msra.mxu0 0.0
    %516 = vmatprep.subr.mxu0 0.0
    %517 = vmatpush2.xpose.msra.mxu0 0.0
    %518 = vmatprep.subr.mxu0 0.0
    %519 = vmatpush2.xpose.msra.mxu0 0.0
    %520 = vmatprep.subr.mxu0 0.0
    %521 = vmatpush2.xpose.msra.mxu0 0.0
    %522 = vmatprep.subr.mxu0 0.0
    %523 = vmatpush2.xpose.msra.mxu0 0.0
    %524 = vmatprep.subr.mxu0 0.0
    %525 = vmatpush2.xpose.msra.mxu0 0.0
    %526 = vmatprep.subr.mxu0 0.0
    %527 = vmatpush2.xpose.msra.mxu0 0.0
    %528 = vmatprep.subr.mxu0 0.0
    %529 = vmatpush2.xpose.msra.mxu0 0.0
    %530 = vmatprep.subr.mxu0 0.0
    %531 = vmatpush2.xpose.msra.mxu0 0.0
    %532 = vmatprep.subr.mxu0 0.0
    %533 = vmatpush2.xpose.msra.mxu0 0.0
    %534 = vmatprep.subr.mxu0 0.0
    %535 = vmatpush2.xpose.msra.mxu0 0.0
    %536 = vmatprep.subr.mxu0 0.0
    %537 = vmatpush2.xpose.msra.mxu0 0.0
    %538 = vmatprep.subr.mxu0 0.0
    %539 = vmatpush2.xpose.msra.mxu0 0.0
    %540 = vmatprep.mubr.f32.mxu0 %v322
    %541 = vmatmul.mubr.f32.gmra.mxu0 %v43
    %v542 = vpop.f32.mrf.mxu0
    %v543 = vadd.f32 %v473, %v542
    %v544 = vpop.f32.mrf.mxu0
    %545 = vdwg.mxu0
    %546 = vmatprep.subr.mxu0 %v296
    %547 = vmatpush1.xpose.msra.mxu0 %v295
    %548 = vmatprep.subr.mxu0 %v280
    %549 = vmatpush1.xpose.msra.mxu0 %v279
    %550 = vmatprep.subr.mxu0 %v264
    %551 = vmatpush1.xpose.msra.mxu0 %v263
    %552 = vmatprep.subr.mxu0 %v248
    %553 = vmatpush1.xpose.msra.mxu0 %v247
    %554 = vmatprep.subr.mxu0 %v232
    %555 = vmatpush1.xpose.msra.mxu0 %v231
    %556 = vmatprep.subr.mxu0 %v216
    %557 = vmatpush1.xpose.msra.mxu0 %v215
    %558 = vmatprep.subr.mxu0 %v200
    %559 = vmatpush1.xpose.msra.mxu0 %v199
    %560 = vmatprep.subr.mxu0 %v184
    %561 = vmatpush1.xpose.msra.mxu0 %v183
    %562 = vmatprep.subr.mxu0 %v168
    %563 = vmatpush1.xpose.msra.mxu0 %v167
    %564 = vmatprep.subr.mxu0 %v152
    %565 = vmatpush1.xpose.msra.mxu0 %v151
    %566 = vmatprep.subr.mxu0 %v136
    %567 = vmatpush1.xpose.msra.mxu0 %v135
    %568 = vmatprep.subr.mxu0 %v120
    %569 = vmatpush1.xpose.msra.mxu0 %v119
    %570 = vmatprep.subr.mxu0 %v104
    %571 = vmatpush1.xpose.msra.mxu0 %v103
    %572 = vmatprep.subr.mxu0 %v88
    %573 = vmatpush1.xpose.msra.mxu0 %v87
    %574 = vmatprep.subr.mxu0 %v72
    %575 = vmatpush1.xpose.msra.mxu0 %v71
    %576 = vmatprep.subr.mxu0 %v56
    %577 = vmatpush1.xpose.msra.mxu0 %v55
    %578 = vmatprep.subr.mxu0 0.0
    %579 = vmatpush2.xpose.msra.mxu0 0.0
    %580 = vmatprep.subr.mxu0 0.0
    %581 = vmatpush2.xpose.msra.mxu0 0.0
    %582 = vmatprep.subr.mxu0 0.0
    %583 = vmatpush2.xpose.msra.mxu0 0.0
    %584 = vmatprep.subr.mxu0 0.0
    %585 = vmatpush2.xpose.msra.mxu0 0.0
    %586 = vmatprep.subr.mxu0 0.0
    %587 = vmatpush2.xpose.msra.mxu0 0.0
    %588 = vmatprep.subr.mxu0 0.0
    %589 = vmatpush2.xpose.msra.mxu0 0.0
    %590 = vmatprep.subr.mxu0 0.0
    %591 = vmatpush2.xpose.msra.mxu0 0.0
    %592 = vmatprep.subr.mxu0 0.0
    %593 = vmatpush2.xpose.msra.mxu0 0.0
    %594 = vmatprep.subr.mxu0 0.0
    %595 = vmatpush2.xpose.msra.mxu0 0.0
    %596 = vmatprep.subr.mxu0 0.0
    %597 = vmatpush2.xpose.msra.mxu0 0.0
    %598 = vmatprep.subr.mxu0 0.0
    %599 = vmatpush2.xpose.msra.mxu0 0.0
    %600 = vmatprep.subr.mxu0 0.0
    %601 = vmatpush2.xpose.msra.mxu0 0.0
    %602 = vmatprep.subr.mxu0 0.0
    %603 = vmatpush2.xpose.msra.mxu0 0.0
    %604 = vmatprep.subr.mxu0 0.0
    %605 = vmatpush2.xpose.msra.mxu0 0.0
    %606 = vmatprep.subr.mxu0 0.0
    %607 = vmatpush2.xpose.msra.mxu0 0.0
    %608 = vmatprep.subr.mxu0 0.0
    %609 = vmatpush2.xpose.msra.mxu0 0.0
    %610 = vmatprep.mubr.f32.mxu0 %v323
    %611 = vmatmul.mubr.f32.gmra.mxu0 %v44
    %v612 = vpop.f32.mrf.mxu0
    %v613 = vadd.f32 %v543, %v612
    %v614 = vpop.f32.mrf.mxu0
    %615 = vdwg.mxu0
    %616 = vmatprep.subr.mxu0 %v298
    %617 = vmatpush1.xpose.msra.mxu0 %v297
    %618 = vmatprep.subr.mxu0 %v282
    %619 = vmatpush1.xpose.msra.mxu0 %v281
    %620 = vmatprep.subr.mxu0 %v266
    %621 = vmatpush1.xpose.msra.mxu0 %v265
    %622 = vmatprep.subr.mxu0 %v250
    %623 = vmatpush1.xpose.msra.mxu0 %v249
    %624 = vmatprep.subr.mxu0 %v234
    %625 = vmatpush1.xpose.msra.mxu0 %v233
    %626 = vmatprep.subr.mxu0 %v218
    %627 = vmatpush1.xpose.msra.mxu0 %v217
    %628 = vmatprep.subr.mxu0 %v202
    %629 = vmatpush1.xpose.msra.mxu0 %v201
    %630 = vmatprep.subr.mxu0 %v186
    %631 = vmatpush1.xpose.msra.mxu0 %v185
    %632 = vmatprep.subr.mxu0 %v170
    %633 = vmatpush1.xpose.msra.mxu0 %v169
    %634 = vmatprep.subr.mxu0 %v154
    %635 = vmatpush1.xpose.msra.mxu0 %v153
    %636 = vmatprep.subr.mxu0 %v138
    %637 = vmatpush1.xpose.msra.mxu0 %v137
    %638 = vmatprep.subr.mxu0 %v122
    %639 = vmatpush1.xpose.msra.mxu0 %v121
    %640 = vmatprep.subr.mxu0 %v106
    %641 = vmatpush1.xpose.msra.mxu0 %v105
    %642 = vmatprep.subr.mxu0 %v90
    %643 = vmatpush1.xpose.msra.mxu0 %v89
    %644 = vmatprep.subr.mxu0 %v74
    %645 = vmatpush1.xpose.msra.mxu0 %v73
    %646 = vmatprep.subr.mxu0 %v58
    %647 = vmatpush1.xpose.msra.mxu0 %v57
    %648 = vmatprep.subr.mxu0 0.0
    %649 = vmatpush2.xpose.msra.mxu0 0.0
    %650 = vmatprep.subr.mxu0 0.0
    %651 = vmatpush2.xpose.msra.mxu0 0.0
    %652 = vmatprep.subr.mxu0 0.0
    %653 = vmatpush2.xpose.msra.mxu0 0.0
    %654 = vmatprep.subr.mxu0 0.0
    %655 = vmatpush2.xpose.msra.mxu0 0.0
    %656 = vmatprep.subr.mxu0 0.0
    %657 = vmatpush2.xpose.msra.mxu0 0.0
    %658 = vmatprep.subr.mxu0 0.0
    %659 = vmatpush2.xpose.msra.mxu0 0.0
    %660 = vmatprep.subr.mxu0 0.0
    %661 = vmatpush2.xpose.msra.mxu0 0.0
    %662 = vmatprep.subr.mxu0 0.0
    %663 = vmatpush2.xpose.msra.mxu0 0.0
    %664 = vmatprep.subr.mxu0 0.0
    %665 = vmatpush2.xpose.msra.mxu0 0.0
    %666 = vmatprep.subr.mxu0 0.0
    %667 = vmatpush2.xpose.msra.mxu0 0.0
    %668 = vmatprep.subr.mxu0 0.0
    %669 = vmatpush2.xpose.msra.mxu0 0.0
    %670 = vmatprep.subr.mxu0 0.0
    %671 = vmatpush2.xpose.msra.mxu0 0.0
    %672 = vmatprep.subr.mxu0 0.0
    %673 = vmatpush2.xpose.msra.mxu0 0.0
    %674 = vmatprep.subr.mxu0 0.0
    %675 = vmatpush2.xpose.msra.mxu0 0.0
    %676 = vmatprep.subr.mxu0 0.0
    %677 = vmatpush2.xpose.msra.mxu0 0.0
    %678 = vmatprep.subr.mxu0 0.0
    %679 = vmatpush2.xpose.msra.mxu0 0.0
    %680 = vmatprep.mubr.f32.mxu0 %v324
    %681 = vmatmul.mubr.f32.gmra.mxu0 %v45
    %v682 = vpop.f32.mrf.mxu0
    %v683 = vadd.f32 %v613, %v682
    %v684 = vpop.f32.mrf.mxu0
    %685 = vdwg.mxu0
    %686 = vmatprep.subr.mxu0 %v300
    %687 = vmatpush1.xpose.msra.mxu0 %v299
    %688 = vmatprep.subr.mxu0 %v284
    %689 = vmatpush1.xpose.msra.mxu0 %v283
    %690 = vmatprep.subr.mxu0 %v268
    %691 = vmatpush1.xpose.msra.mxu0 %v267
    %692 = vmatprep.subr.mxu0 %v252
    %693 = vmatpush1.xpose.msra.mxu0 %v251
    %694 = vmatprep.subr.mxu0 %v236
    %695 = vmatpush1.xpose.msra.mxu0 %v235
    %696 = vmatprep.subr.mxu0 %v220
    %697 = vmatpush1.xpose.msra.mxu0 %v219
    %698 = vmatprep.subr.mxu0 %v204
    %699 = vmatpush1.xpose.msra.mxu0 %v203
    %700 = vmatprep.subr.mxu0 %v188
    %701 = vmatpush1.xpose.msra.mxu0 %v187
    %702 = vmatprep.subr.mxu0 %v172
    %703 = vmatpush1.xpose.msra.mxu0 %v171
    %704 = vmatprep.subr.mxu0 %v156
    %705 = vmatpush1.xpose.msra.mxu0 %v155
    %706 = vmatprep.subr.mxu0 %v140
    %707 = vmatpush1.xpose.msra.mxu0 %v139
    %708 = vmatprep.subr.mxu0 %v124
    %709 = vmatpush1.xpose.msra.mxu0 %v123
    %710 = vmatprep.subr.mxu0 %v108
    %711 = vmatpush1.xpose.msra.mxu0 %v107
    %712 = vmatprep.subr.mxu0 %v92
    %713 = vmatpush1.xpose.msra.mxu0 %v91
    %714 = vmatprep.subr.mxu0 %v76
    %715 = vmatpush1.xpose.msra.mxu0 %v75
    %716 = vmatprep.subr.mxu0 %v60
    %717 = vmatpush1.xpose.msra.mxu0 %v59
    %718 = vmatprep.subr.mxu0 0.0
    %719 = vmatpush2.xpose.msra.mxu0 0.0
    %720 = vmatprep.subr.mxu0 0.0
    %721 = vmatpush2.xpose.msra.mxu0 0.0
    %722 = vmatprep.subr.mxu0 0.0
    %723 = vmatpush2.xpose.msra.mxu0 0.0
    %724 = vmatprep.subr.mxu0 0.0
    %725 = vmatpush2.xpose.msra.mxu0 0.0
    %726 = vmatprep.subr.mxu0 0.0
    %727 = vmatpush2.xpose.msra.mxu0 0.0
    %728 = vmatprep.subr.mxu0 0.0
    %729 = vmatpush2.xpose.msra.mxu0 0.0
    %730 = vmatprep.subr.mxu0 0.0
    %731 = vmatpush2.xpose.msra.mxu0 0.0
    %732 = vmatprep.subr.mxu0 0.0
    %733 = vmatpush2.xpose.msra.mxu0 0.0
    %734 = vmatprep.subr.mxu0 0.0
    %735 = vmatpush2.xpose.msra.mxu0 0.0
    %736 = vmatprep.subr.mxu0 0.0
    %737 = vmatpush2.xpose.msra.mxu0 0.0
    %738 = vmatprep.subr.mxu0 0.0
    %739 = vmatpush2.xpose.msra.mxu0 0.0
    %740 = vmatprep.subr.mxu0 0.0
    %741 = vmatpush2.xpose.msra.mxu0 0.0
    %742 = vmatprep.subr.mxu0 0.0
    %743 = vmatpush2.xpose.msra.mxu0 0.0
    %744 = vmatprep.subr.mxu0 0.0
    %745 = vmatpush2.xpose.msra.mxu0 0.0
    %746 = vmatprep.subr.mxu0 0.0
    %747 = vmatpush2.xpose.msra.mxu0 0.0
    %748 = vmatprep.subr.mxu0 0.0
    %749 = vmatpush2.xpose.msra.mxu0 0.0
    %750 = vmatprep.mubr.f32.mxu0 %v325
    %751 = vmatmul.mubr.f32.gmra.mxu0 %v46
    %v752 = vpop.f32.mrf.mxu0
    %v753 = vadd.f32 %v683, %v752
    %v754 = vpop.f32.mrf.mxu0
    %755 = vdwg.mxu0
    %756 = vmatprep.subr.mxu0 %v302
    %757 = vmatpush1.xpose.msra.mxu0 %v301
    %758 = vmatprep.subr.mxu0 %v286
    %759 = vmatpush1.xpose.msra.mxu0 %v285
    %760 = vmatprep.subr.mxu0 %v270
    %761 = vmatpush1.xpose.msra.mxu0 %v269
    %762 = vmatprep.subr.mxu0 %v254
    %763 = vmatpush1.xpose.msra.mxu0 %v253
    %764 = vmatprep.subr.mxu0 %v238
    %765 = vmatpush1.xpose.msra.mxu0 %v237
    %766 = vmatprep.subr.mxu0 %v222
    %767 = vmatpush1.xpose.msra.mxu0 %v221
    %768 = vmatprep.subr.mxu0 %v206
    %769 = vmatpush1.xpose.msra.mxu0 %v205
    %770 = vmatprep.subr.mxu0 %v190
    %771 = vmatpush1.xpose.msra.mxu0 %v189
    %772 = vmatprep.subr.mxu0 %v174
    %773 = vmatpush1.xpose.msra.mxu0 %v173
    %774 = vmatprep.subr.mxu0 %v158
    %775 = vmatpush1.xpose.msra.mxu0 %v157
    %776 = vmatprep.subr.mxu0 %v142
    %777 = vmatpush1.xpose.msra.mxu0 %v141
    %778 = vmatprep.subr.mxu0 %v126
    %779 = vmatpush1.xpose.msra.mxu0 %v125
    %780 = vmatprep.subr.mxu0 %v110
    %781 = vmatpush1.xpose.msra.mxu0 %v109
    %782 = vmatprep.subr.mxu0 %v94
    %783 = vmatpush1.xpose.msra.mxu0 %v93
    %784 = vmatprep.subr.mxu0 %v78
    %785 = vmatpush1.xpose.msra.mxu0 %v77
    %786 = vmatprep.subr.mxu0 %v62
    %787 = vmatpush1.xpose.msra.mxu0 %v61
    %788 = vmatprep.subr.mxu0 0.0
    %789 = vmatpush2.xpose.msra.mxu0 0.0
    %790 = vmatprep.subr.mxu0 0.0
    %791 = vmatpush2.xpose.msra.mxu0 0.0
    %792 = vmatprep.subr.mxu0 0.0
    %793 = vmatpush2.xpose.msra.mxu0 0.0
    %794 = vmatprep.subr.mxu0 0.0
    %795 = vmatpush2.xpose.msra.mxu0 0.0
    %796 = vmatprep.subr.mxu0 0.0
    %797 = vmatpush2.xpose.msra.mxu0 0.0
    %798 = vmatprep.subr.mxu0 0.0
    %799 = vmatpush2.xpose.msra.mxu0 0.0
    %800 = vmatprep.subr.mxu0 0.0
    %801 = vmatpush2.xpose.msra.mxu0 0.0
    %802 = vmatprep.subr.mxu0 0.0
    %803 = vmatpush2.xpose.msra.mxu0 0.0
    %804 = vmatprep.subr.mxu0 0.0
    %805 = vmatpush2.xpose.msra.mxu0 0.0
    %806 = vmatprep.subr.mxu0 0.0
    %807 = vmatpush2.xpose.msra.mxu0 0.0
    %808 = vmatprep.subr.mxu0 0.0
    %809 = vmatpush2.xpose.msra.mxu0 0.0
    %810 = vmatprep.subr.mxu0 0.0
    %811 = vmatpush2.xpose.msra.mxu0 0.0
    %812 = vmatprep.subr.mxu0 0.0
    %813 = vmatpush2.xpose.msra.mxu0 0.0
    %814 = vmatprep.subr.mxu0 0.0
    %815 = vmatpush2.xpose.msra.mxu0 0.0
    %816 = vmatprep.subr.mxu0 0.0
    %817 = vmatpush2.xpose.msra.mxu0 0.0
    %818 = vmatprep.subr.mxu0 0.0
    %819 = vmatpush2.xpose.msra.mxu0 0.0
    %820 = vmatprep.mubr.f32.mxu0 %v326
    %821 = vmatmul.mubr.f32.gmra.mxu0 %v47
    %v822 = vpop.f32.mrf.mxu0
    %v823 = vadd.f32 %v753, %v822
    %v824 = vpop.f32.mrf.mxu0
    %825 = vdwg.mxu0
    %826 = vmatprep.subr.mxu0 %v304
    %827 = vmatpush1.xpose.msra.mxu0 %v303
    %828 = vmatprep.subr.mxu0 %v288
    %829 = vmatpush1.xpose.msra.mxu0 %v287
    %830 = vmatprep.subr.mxu0 %v272
    %831 = vmatpush1.xpose.msra.mxu0 %v271
    %832 = vmatprep.subr.mxu0 %v256
    %833 = vmatpush1.xpose.msra.mxu0 %v255
    %834 = vmatprep.subr.mxu0 %v240
    %835 = vmatpush1.xpose.msra.mxu0 %v239
    %836 = vmatprep.subr.mxu0 %v224
    %837 = vmatpush1.xpose.msra.mxu0 %v223
    %838 = vmatprep.subr.mxu0 %v208
    %839 = vmatpush1.xpose.msra.mxu0 %v207
    %840 = vmatprep.subr.mxu0 %v192
    %841 = vmatpush1.xpose.msra.mxu0 %v191
    %842 = vmatprep.subr.mxu0 %v176
    %843 = vmatpush1.xpose.msra.mxu0 %v175
    %844 = vmatprep.subr.mxu0 %v160
    %845 = vmatpush1.xpose.msra.mxu0 %v159
    %846 = vmatprep.subr.mxu0 %v144
    %847 = vmatpush1.xpose.msra.mxu0 %v143
    %848 = vmatprep.subr.mxu0 %v128
    %849 = vmatpush1.xpose.msra.mxu0 %v127
    %850 = vmatprep.subr.mxu0 %v112
    %851 = vmatpush1.xpose.msra.mxu0 %v111
    %852 = vmatprep.subr.mxu0 %v96
    %853 = vmatpush1.xpose.msra.mxu0 %v95
    %854 = vmatprep.subr.mxu0 %v80
    %855 = vmatpush1.xpose.msra.mxu0 %v79
    %856 = vmatprep.subr.mxu0 %v64
    %857 = vmatpush1.xpose.msra.mxu0 %v63
    %858 = vmatprep.subr.mxu0 0.0
    %859 = vmatpush2.xpose.msra.mxu0 0.0
    %860 = vmatprep.subr.mxu0 0.0
    %861 = vmatpush2.xpose.msra.mxu0 0.0
    %862 = vmatprep.subr.mxu0 0.0
    %863 = vmatpush2.xpose.msra.mxu0 0.0
    %864 = vmatprep.subr.mxu0 0.0
    %865 = vmatpush2.xpose.msra.mxu0 0.0
    %866 = vmatprep.subr.mxu0 0.0
    %867 = vmatpush2.xpose.msra.mxu0 0.0
    %868 = vmatprep.subr.mxu0 0.0
    %869 = vmatpush2.xpose.msra.mxu0 0.0
    %870 = vmatprep.subr.mxu0 0.0
    %871 = vmatpush2.xpose.msra.mxu0 0.0
    %872 = vmatprep.subr.mxu0 0.0
    %873 = vmatpush2.xpose.msra.mxu0 0.0
    %874 = vmatprep.subr.mxu0 0.0
    %875 = vmatpush2.xpose.msra.mxu0 0.0
    %876 = vmatprep.subr.mxu0 0.0
    %877 = vmatpush2.xpose.msra.mxu0 0.0
    %878 = vmatprep.subr.mxu0 0.0
    %879 = vmatpush2.xpose.msra.mxu0 0.0
    %880 = vmatprep.subr.mxu0 0.0
    %881 = vmatpush2.xpose.msra.mxu0 0.0
    %882 = vmatprep.subr.mxu0 0.0
    %883 = vmatpush2.xpose.msra.mxu0 0.0
    %884 = vmatprep.subr.mxu0 0.0
    %885 = vmatpush2.xpose.msra.mxu0 0.0
    %886 = vmatprep.subr.mxu0 0.0
    %887 = vmatpush2.xpose.msra.mxu0 0.0
    %888 = vmatprep.subr.mxu0 0.0
    %889 = vmatpush2.xpose.msra.mxu0 0.0
    %890 = vmatprep.mubr.f32.mxu0 %v327
    %891 = vmatmul.mubr.f32.gmra.mxu0 %v48
    %v892 = vpop.f32.mrf.mxu0
    %v893 = vadd.f32 %v823, %v892
    %v894 = vpop.f32.mrf.mxu0
    %895 = vdwg.mxu0
    %896 = vst [vmem:[#allocation7] sm:$0xf] %v893
    // Predicated region
    $region22: #{tpu_custom_call.1} parent=1 // pred_check
      _
    $region23: #{tpu_custom_call.1} parent=1 // pred_check_branch
      %898 = sbr.rel (0) target = $region25
    $region24: #{tpu_custom_call.1} parent=1 // pred_region
      %s900 = ssub.s32 64, 64
      %901 = vsyncadd [#allocation4], %s900
      %s903 = sshll.u32 [#allocation7], 4
      %s904 = int_to_ptr.vmem [resolvable:$true] %s903
      %906 = dma.vmem_to_hbm [thread:$0]  %s904, 64, %s3, [#allocation4]
    $region25: #{tpu_custom_call.1} parent=1 // pred_fallthru
      _
    // Predicated region
    $region26: #{tpu_custom_call.1} parent=1 // pred_check
      _
    $region27: #{tpu_custom_call.1} parent=1 // pred_check_branch
      %908 = sbr.rel (0) target = $region29
    $region28: #{tpu_custom_call.1} parent=1 // pred_region
      %909 = dma.done [#allocation4], 64
    $region29: #{tpu_custom_call.1} parent=1 // pred_fallthru
      _
    %910 = vsyncpa [#allocation3], 1
    %911 = vsyncpa [#allocation6], 1
    %912 = vsyncpa [#allocation4], 1

</llo_original>
